<compile_context>
chip_gen: v5e
topology: v5e:2x2
jax: 0.10.0
libtpu: 0.0.40
codegen_flags: <defaults>
</compile_context>

<pallas_src>
import functools

import jax
import jax.numpy as jnp
from jax.experimental import pallas as pl
from jax.experimental.pallas import tpu as pltpu

LANE = 128
NEG_BIG = -1e30  # finite "-inf" for masked softmax lanes (avoids NaN rows)


def _round_up(n, m):
    return ((n + m - 1) // m) * m


def _leaky_relu(x, negative_slope=0.2):
    # mul + max (2 VALU ops) instead of cmp + mul + select.
    return jnp.maximum(x, negative_slope * x)


def mlp_kernel(x_ref,
               w1_ref, b1_ref,
               w2_ref, b2_ref,
               w3_ref, b3_ref,
               w4_ref, b4_ref,
               o_ref):
    """One batch tile: fused (Linear -> LeakyReLU) x3 -> Linear -> Softmax.

    MXU operands may be bf16 (cast here for activations, host-side for
    weights); accumulation and all elementwise math are f32.  Padded output
    lanes are handled entirely by the params: padded w4 columns are zero and
    their b4 lanes are NEG_BIG, so those logits never win the softmax.
    """

    def linear(a, w_ref, b_ref):
        y = jnp.dot(a.astype(w_ref.dtype), w_ref[...],
                    preferred_element_type=jnp.float32)
        return y + b_ref[...]

    h = _leaky_relu(linear(x_ref[...], w1_ref, b1_ref))
    h = _leaky_relu(linear(h, w2_ref, b2_ref))
    h = _leaky_relu(linear(h, w3_ref, b3_ref))
    logits = linear(h, w4_ref, b4_ref)          # padded lanes == NEG_BIG

    m = jnp.max(logits, axis=-1, keepdims=True)
    e = jnp.exp(logits - m)
    denom = jnp.sum(e, axis=-1, keepdims=True)
    # Exact divide: denom is a narrow (tile_b, 1) column, cost is negligible
    # and rows normalize to 1 at f32 precision.
    o_ref[...] = (e / denom).astype(o_ref.dtype)


def pack_params(params, *, matmul_dtype=jnp.bfloat16):
    """Pad / cast the parameters once, outside the forward path.

    Weights are stored (in, out) == torch weight.T.  Hidden/output feature
    dims are padded to multiples of 128 (lane-dense tiles); the K side of
    layer 1 (in_dim) is NOT padded (MXU handles K < 128, and x keeps its
    natural width).  Padded b4 lanes get NEG_BIG -> free softmax mask.
    """
    in_dim = params["w1"].shape[0]
    h1, h2, h3, out_dim = (params[f"w{i}"].shape[1] for i in range(1, 5))
    h1p, h2p, h3p, outp = (_round_up(d, LANE) for d in (h1, h2, h3, out_dim))

    def pad_w(w, rows, cols):
        return jnp.pad(w, ((0, rows - w.shape[0]),
                           (0, cols - w.shape[1]))).astype(matmul_dtype)

    def pad_b(b, cols, fill=0.0):
        return jnp.pad(b, ((0, 0), (0, cols - b.shape[1])),
                       constant_values=fill).astype(jnp.float32)

    return {
        "w1": pad_w(params["w1"], in_dim, h1p), "b1": pad_b(params["b1"], h1p),
        "w2": pad_w(params["w2"], h1p, h2p),    "b2": pad_b(params["b2"], h2p),
        "w3": pad_w(params["w3"], h2p, h3p),    "b3": pad_b(params["b3"], h3p),
        "w4": pad_w(params["w4"], h3p, outp),
        "b4": pad_b(params["b4"], outp, fill=NEG_BIG),
    }


def net_forward(x, packed, *, out_dim, tile_b=1024):
    """x: (B, in_dim) float32.  packed: output of pack_params."""
    B, in_dim = x.shape
    assert in_dim == packed["w1"].shape[0]
    out_p = packed["b4"].shape[1]

    # Batch tiling: multiple of 8 (satisfies the (8,128) block rule), large
    # tiles amortize the ~0.35 us per-grid-step overhead, and a cap at half
    # the (rounded) batch keeps >=2 grid steps so v7x's 2 TCs both get work.
    tile_b = max(8, _round_up(tile_b, 8))
    tile_b = min(tile_b, max(8, _round_up(pl.cdiv(B, 2), 8)))
    b_pad = _round_up(B, tile_b)
    x_p = x if b_pad == B else jnp.pad(x, ((0, b_pad - B), (0, 0)))

    grid = (b_pad // tile_b,)
    const = lambda i: (0, 0)      # weights/biases: VMEM-resident, no re-DMA
    batched = lambda i: (i, 0)    # x / out: one batch tile per grid step

    w1, b1 = packed["w1"], packed["b1"]
    w2, b2 = packed["w2"], packed["b2"]
    w3, b3 = packed["w3"], packed["b3"]
    w4, b4 = packed["w4"], packed["b4"]

    out_padded = pl.pallas_call(
        mlp_kernel,
        out_shape=jax.ShapeDtypeStruct((b_pad, out_p), jnp.float32),
        grid=grid,
        in_specs=[
            pl.BlockSpec((tile_b, in_dim), batched),
            pl.BlockSpec(w1.shape, const), pl.BlockSpec(b1.shape, const),
            pl.BlockSpec(w2.shape, const), pl.BlockSpec(b2.shape, const),
            pl.BlockSpec(w3.shape, const), pl.BlockSpec(b3.shape, const),
            pl.BlockSpec(w4.shape, const), pl.BlockSpec(b4.shape, const),
        ],
        out_specs=pl.BlockSpec((tile_b, out_p), batched),
        compiler_params=pltpu.CompilerParams(
            dimension_semantics=("parallel",)),
    )(x_p, w1, b1, w2, b2, w3, b3, w4, b4)

    return out_padded[:B, :out_dim]


def init_params(key, in_dim, h1, h2, h3, out_dim):
    """Deterministic init mirroring nn.Linear's uniform(-1/sqrt(fan_in), ...)."""
    dims = [(in_dim, h1), (h1, h2), (h2, h3), (h3, out_dim)]
    params = {}
    keys = jax.random.split(key, 2 * len(dims))
    for i, (fan_in, fan_out) in enumerate(dims):
        bound = 1.0 / jnp.sqrt(jnp.float32(fan_in))
        # Stored as (in, out): equivalent to PyTorch weight.T
        w = jax.random.uniform(keys[2 * i], (fan_in, fan_out),
                               minval=-bound, maxval=bound, dtype=jnp.float32)
        b = jax.random.uniform(keys[2 * i + 1], (1, fan_out),
                               minval=-bound, maxval=bound, dtype=jnp.float32)
        params[f"w{i + 1}"] = w
        params[f"b{i + 1}"] = b
    return params


def reference_forward(x, params):
    h = x
    for i in range(1, 4):
        h = h @ params[f"w{i}"] + params[f"b{i}"]
        h = jnp.where(h > 0, h, 0.2 * h)
    h = h @ params["w4"] + params["b4"]
    return jax.nn.softmax(h, axis=1)


if __name__ == "__main__":
    key = jax.random.PRNGKey(0)
    k_x, k_p = jax.random.split(key)

    # Small shapes implied by the forward pass (2-D input: batch x features).
    # batch=20 exercises the multi-tile grid (2 tiles of 16 rows) plus the
    # padded-row / padded-lane slicing path.
    batch, in_dim, h1, h2, h3, out_dim = 20, 32, 64, 64, 32, 16

    x = jax.random.normal(k_x, (batch, in_dim), dtype=jnp.float32)
    params = init_params(k_p, in_dim, h1, h2, h3, out_dim)

    packed = pack_params(params, matmul_dtype=jnp.bfloat16)
    fwd = jax.jit(functools.partial(net_forward, out_dim=out_dim, tile_b=1024))

    out = jax.block_until_ready(fwd(x, packed))
    ref = reference_forward(x, params)

    assert out.shape == (batch, out_dim)
    # bf16 MXU operands (f32 accumulation) vs a pure-f32 reference.
    assert jnp.allclose(out, ref, atol=2e-2, rtol=2e-2), "mismatch vs reference"
    # Exact softmax divide -> rows normalize at f32 precision.
    assert jnp.allclose(jnp.sum(out, axis=1), 1.0, atol=1e-4), "softmax rows != 1"

    print("KERNEL_OK")
</pallas_src>

<mosaic_0001>
module attributes {stable_mosaic.version = 11 : i64} {
  func.func @mlp_kernel(%arg0: i32, %arg1: memref<16x32xf32, #tpu.memory_space<vmem>>, %arg2: memref<32x128xbf16, #tpu.memory_space<vmem>>, %arg3: memref<1x128xf32, #tpu.memory_space<vmem>>, %arg4: memref<128x128xbf16, #tpu.memory_space<vmem>>, %arg5: memref<1x128xf32, #tpu.memory_space<vmem>>, %arg6: memref<128x128xbf16, #tpu.memory_space<vmem>>, %arg7: memref<1x128xf32, #tpu.memory_space<vmem>>, %arg8: memref<128x128xbf16, #tpu.memory_space<vmem>>, %arg9: memref<1x128xf32, #tpu.memory_space<vmem>>, %arg10: memref<16x128xf32, #tpu.memory_space<vmem>>) attributes {dimension_semantics = [#tpu.dimension_semantics<parallel>], iteration_bounds = array<i64: 2>, scalar_prefetch = 0 : i64, scratch_operands = 0 : i64, tpu.core_type = #tpu.core_type<tc>, window_params = [{transform_indices = @transform_0, window_bounds = array<i64: 16, 32>}, {pipeline_mode = #tpu.pipeline_mode<synchronous>, transform_indices = @transform_1, window_bounds = array<i64: 32, 128>}, {pipeline_mode = #tpu.pipeline_mode<synchronous>, transform_indices = @transform_2, window_bounds = array<i64: 1, 128>}, {pipeline_mode = #tpu.pipeline_mode<synchronous>, transform_indices = @transform_3, window_bounds = array<i64: 128, 128>}, {pipeline_mode = #tpu.pipeline_mode<synchronous>, transform_indices = @transform_4, window_bounds = array<i64: 1, 128>}, {pipeline_mode = #tpu.pipeline_mode<synchronous>, transform_indices = @transform_5, window_bounds = array<i64: 128, 128>}, {pipeline_mode = #tpu.pipeline_mode<synchronous>, transform_indices = @transform_6, window_bounds = array<i64: 1, 128>}, {pipeline_mode = #tpu.pipeline_mode<synchronous>, transform_indices = @transform_7, window_bounds = array<i64: 128, 128>}, {pipeline_mode = #tpu.pipeline_mode<synchronous>, transform_indices = @transform_8, window_bounds = array<i64: 1, 128>}, {transform_indices = @transform_9, window_bounds = array<i64: 16, 128>}]} {
    %c0 = arith.constant 0 : index
    %c0_0 = arith.constant 0 : index
    %0 = vector.load %arg1[%c0, %c0_0] : memref<16x32xf32, #tpu.memory_space<vmem>>, vector<16x32xf32>
    %1 = arith.truncf %0 : vector<16x32xf32> to vector<16x32xbf16>
    %c0_1 = arith.constant 0 : index
    %c0_2 = arith.constant 0 : index
    %2 = vector.load %arg2[%c0_1, %c0_2] : memref<32x128xbf16, #tpu.memory_space<vmem>>, vector<32x128xbf16>
    %cst = arith.constant dense<0.000000e+00> : vector<16x128xf32>
    %3 = tpu.matmul %1, %2, %cst {dimension_numbers = #tpu.dot_dimension_numbers<[1], [0], [0], [1], [0, 0, 1, 1], [], []>} : vector<16x32xbf16>, vector<32x128xbf16>, vector<16x128xf32> -> vector<16x128xf32>
    %c0_3 = arith.constant 0 : index
    %c0_4 = arith.constant 0 : index
    %4 = vector.load %arg3[%c0_3, %c0_4] : memref<1x128xf32, #tpu.memory_space<vmem>>, vector<1x128xf32>
    %5 = vector.broadcast %4 : vector<1x128xf32> to vector<16x128xf32>
    %6 = arith.addf %3, %5 : vector<16x128xf32>
    %cst_5 = arith.constant 2.000000e-01 : f32
    %7 = vector.broadcast %cst_5 : f32 to vector<16x128xf32>
    %8 = arith.mulf %7, %6 : vector<16x128xf32>
    %9 = arith.maximumf %6, %8 : vector<16x128xf32>
    %10 = arith.truncf %9 : vector<16x128xf32> to vector<16x128xbf16>
    %c0_6 = arith.constant 0 : index
    %c0_7 = arith.constant 0 : index
    %11 = vector.load %arg4[%c0_6, %c0_7] : memref<128x128xbf16, #tpu.memory_space<vmem>>, vector<128x128xbf16>
    %cst_8 = arith.constant dense<0.000000e+00> : vector<16x128xf32>
    %12 = tpu.matmul %10, %11, %cst_8 {dimension_numbers = #tpu.dot_dimension_numbers<[1], [0], [0], [1], [0, 0, 1, 1], [], []>} : vector<16x128xbf16>, vector<128x128xbf16>, vector<16x128xf32> -> vector<16x128xf32>
    %c0_9 = arith.constant 0 : index
    %c0_10 = arith.constant 0 : index
    %13 = vector.load %arg5[%c0_9, %c0_10] : memref<1x128xf32, #tpu.memory_space<vmem>>, vector<1x128xf32>
    %14 = vector.broadcast %13 : vector<1x128xf32> to vector<16x128xf32>
    %15 = arith.addf %12, %14 : vector<16x128xf32>
    %cst_11 = arith.constant 2.000000e-01 : f32
    %16 = vector.broadcast %cst_11 : f32 to vector<16x128xf32>
    %17 = arith.mulf %16, %15 : vector<16x128xf32>
    %18 = arith.maximumf %15, %17 : vector<16x128xf32>
    %19 = arith.truncf %18 : vector<16x128xf32> to vector<16x128xbf16>
    %c0_12 = arith.constant 0 : index
    %c0_13 = arith.constant 0 : index
    %20 = vector.load %arg6[%c0_12, %c0_13] : memref<128x128xbf16, #tpu.memory_space<vmem>>, vector<128x128xbf16>
    %cst_14 = arith.constant dense<0.000000e+00> : vector<16x128xf32>
    %21 = tpu.matmul %19, %20, %cst_14 {dimension_numbers = #tpu.dot_dimension_numbers<[1], [0], [0], [1], [0, 0, 1, 1], [], []>} : vector<16x128xbf16>, vector<128x128xbf16>, vector<16x128xf32> -> vector<16x128xf32>
    %c0_15 = arith.constant 0 : index
    %c0_16 = arith.constant 0 : index
    %22 = vector.load %arg7[%c0_15, %c0_16] : memref<1x128xf32, #tpu.memory_space<vmem>>, vector<1x128xf32>
    %23 = vector.broadcast %22 : vector<1x128xf32> to vector<16x128xf32>
    %24 = arith.addf %21, %23 : vector<16x128xf32>
    %cst_17 = arith.constant 2.000000e-01 : f32
    %25 = vector.broadcast %cst_17 : f32 to vector<16x128xf32>
    %26 = arith.mulf %25, %24 : vector<16x128xf32>
    %27 = arith.maximumf %24, %26 : vector<16x128xf32>
    %28 = arith.truncf %27 : vector<16x128xf32> to vector<16x128xbf16>
    %c0_18 = arith.constant 0 : index
    %c0_19 = arith.constant 0 : index
    %29 = vector.load %arg8[%c0_18, %c0_19] : memref<128x128xbf16, #tpu.memory_space<vmem>>, vector<128x128xbf16>
    %cst_20 = arith.constant dense<0.000000e+00> : vector<16x128xf32>
    %30 = tpu.matmul %28, %29, %cst_20 {dimension_numbers = #tpu.dot_dimension_numbers<[1], [0], [0], [1], [0, 0, 1, 1], [], []>} : vector<16x128xbf16>, vector<128x128xbf16>, vector<16x128xf32> -> vector<16x128xf32>
    %c0_21 = arith.constant 0 : index
    %c0_22 = arith.constant 0 : index
    %31 = vector.load %arg9[%c0_21, %c0_22] : memref<1x128xf32, #tpu.memory_space<vmem>>, vector<1x128xf32>
    %32 = vector.broadcast %31 : vector<1x128xf32> to vector<16x128xf32>
    %33 = arith.addf %30, %32 : vector<16x128xf32>
    %cst_23 = arith.constant dense<0xFF800000> : vector<16xf32>
    %34 = vector.multi_reduction <maximumf>, %33, %cst_23 [1] : vector<16x128xf32> to vector<16xf32>
    %35 = vector.shape_cast %34 : vector<16xf32> to vector<16x1xf32>
    %36 = vector.broadcast %35 : vector<16x1xf32> to vector<16x128xf32>
    %37 = arith.subf %33, %36 : vector<16x128xf32>
    %38 = math.exp %37 : vector<16x128xf32>
    %cst_24 = arith.constant dense<0.000000e+00> : vector<16xf32>
    %39 = vector.multi_reduction <add>, %38, %cst_24 [1] : vector<16x128xf32> to vector<16xf32>
    %40 = vector.shape_cast %39 : vector<16xf32> to vector<16x1xf32>
    %41 = vector.broadcast %40 : vector<16x1xf32> to vector<16x128xf32>
    %42 = arith.divf %38, %41 : vector<16x128xf32>
    %c0_25 = arith.constant 0 : index
    %c0_26 = arith.constant 0 : index
    %43 = vector.load %arg10[%c0_25, %c0_26] : memref<16x128xf32, #tpu.memory_space<vmem>>, vector<16x128xf32>
    tpu.vector_store %arg10[%c0_25, %c0_26], %42 {strides = array<i32>} : memref<16x128xf32, #tpu.memory_space<vmem>>, vector<16x128xf32>,
    return
  }
  func.func @transform_0(%arg0: i32) -> (i32, i32) {
    %c0_i32 = arith.constant 0 : i32
    %c0_i32_0 = arith.constant 0 : i32
    return %arg0, %c0_i32 : i32, i32
  }
  func.func @transform_1(%arg0: i32) -> (i32, i32) {
    %c0_i32 = arith.constant 0 : i32
    %c0_i32_0 = arith.constant 0 : i32
    %c0_i32_1 = arith.constant 0 : i32
    return %c0_i32, %c0_i32_0 : i32, i32
  }
  func.func @transform_2(%arg0: i32) -> (i32, i32) {
    %c0_i32 = arith.constant 0 : i32
    %c0_i32_0 = arith.constant 0 : i32
    %c0_i32_1 = arith.constant 0 : i32
    return %c0_i32, %c0_i32_0 : i32, i32
  }
  func.func @transform_3(%arg0: i32) -> (i32, i32) {
    %c0_i32 = arith.constant 0 : i32
    %c0_i32_0 = arith.constant 0 : i32
    %c0_i32_1 = arith.constant 0 : i32
    return %c0_i32, %c0_i32_0 : i32, i32
  }
  func.func @transform_4(%arg0: i32) -> (i32, i32) {
    %c0_i32 = arith.constant 0 : i32
    %c0_i32_0 = arith.constant 0 : i32
    %c0_i32_1 = arith.constant 0 : i32
    return %c0_i32, %c0_i32_0 : i32, i32
  }
  func.func @transform_5(%arg0: i32) -> (i32, i32) {
    %c0_i32 = arith.constant 0 : i32
    %c0_i32_0 = arith.constant 0 : i32
    %c0_i32_1 = arith.constant 0 : i32
    return %c0_i32, %c0_i32_0 : i32, i32
  }
  func.func @transform_6(%arg0: i32) -> (i32, i32) {
    %c0_i32 = arith.constant 0 : i32
    %c0_i32_0 = arith.constant 0 : i32
    %c0_i32_1 = arith.constant 0 : i32
    return %c0_i32, %c0_i32_0 : i32, i32
  }
  func.func @transform_7(%arg0: i32) -> (i32, i32) {
    %c0_i32 = arith.constant 0 : i32
    %c0_i32_0 = arith.constant 0 : i32
    %c0_i32_1 = arith.constant 0 : i32
    return %c0_i32, %c0_i32_0 : i32, i32
  }
  func.func @transform_8(%arg0: i32) -> (i32, i32) {
    %c0_i32 = arith.constant 0 : i32
    %c0_i32_0 = arith.constant 0 : i32
    %c0_i32_1 = arith.constant 0 : i32
    return %c0_i32, %c0_i32_0 : i32, i32
  }
  func.func @transform_9(%arg0: i32) -> (i32, i32) {
    %c0_i32 = arith.constant 0 : i32
    %c0_i32_0 = arith.constant 0 : i32
    return %arg0, %c0_i32 : i32, i32
  }
}

</mosaic_0001>

<llo_original>
// kernel: net_forward.1
$region0: #{net_forward.1}
  #allocation0 [shape = 'u32[]', space=smem, size = 0x4, offset = 0x4, fixed_abs, tag = 'smem constant byte address 0x4 - core index']
  #allocation1 [shape = 'u32[72,128]{1,0:T(1,128)}', space=vmem, size = 0x9000, scoped, tag = 'internal scratch']
  %s0 = inlined_call_operand.vmem [shape: f32[32,32], index: 0, kind: input, shape index: {}]
  %s1 = inlined_call_operand.hbm [shape: bf16[32,128], index: 1, kind: input, shape index: {}]
  %s2 = inlined_call_operand.hbm [shape: f32[1,128], index: 2, kind: input, shape index: {}]
  %s3 = inlined_call_operand.hbm [shape: bf16[128,128], index: 3, kind: input, shape index: {}]
  %s4 = inlined_call_operand.hbm [shape: f32[1,128], index: 4, kind: input, shape index: {}]
  %s5 = inlined_call_operand.hbm [shape: bf16[128,128], index: 5, kind: input, shape index: {}]
  %s6 = inlined_call_operand.hbm [shape: f32[1,128], index: 6, kind: input, shape index: {}]
  %s7 = inlined_call_operand.vmem [shape: bf16[128,128], index: 7, kind: input, shape index: {}]
  %s8 = inlined_call_operand.hbm [shape: f32[1,128], index: 8, kind: input, shape index: {}]
  %s9 = inlined_call_operand.vmem [shape: f32[32,128], index: 9, kind: output, shape index: {}]
  %s10 = sld [smem:[#allocation0]]
  $region97: #{net_forward.1} parent=0
    _
  %s12 = ssub.s32 1, %s10
  %s13 = scalar_select 0, %s12, %s10
  $region1: #{net_forward.1} parent=0
    #allocation2 [shape = 'u8[8192]{0}', space=vmem, size = 0x2000, scoped, tag = 'input window, operand 1, single buffered']
    #allocation3 [shape = 's32[2]{0}', space=sflag, size = 0x8, scoped, tag = 'scoped memory for net_forward.1']
    #allocation4 [shape = 'u8[512]{0}', space=vmem, size = 0x400, scoped, tag = 'input window, operand 2, single buffered']
    #allocation5 [shape = 's32[1]{0}', space=sflag, size = 0x4, scoped, tag = 'scoped memory for net_forward.1']
    #allocation6 [shape = 'u8[32768]{0}', space=vmem, size = 0x8000, scoped, tag = 'input window, operand 3, single buffered']
    #allocation7 [shape = 'u8[512]{0}', space=vmem, size = 0x400, scoped, tag = 'input window, operand 4, single buffered']
    #allocation8 [shape = 's32[1]{0}', space=sflag, size = 0x4, scoped, tag = 'scoped memory for net_forward.1']
    #allocation9 [shape = 'u8[32768]{0}', space=vmem, size = 0x8000, scoped, tag = 'input window, operand 5, single buffered']
    #allocation10 [shape = 'u8[512]{0}', space=vmem, size = 0x400, scoped, tag = 'input window, operand 6, single buffered']
    #allocation11 [shape = 's32[1]{0}', space=sflag, size = 0x4, scoped, tag = 'scoped memory for net_forward.1']
    #allocation12 [shape = 'u8[512]{0}', space=vmem, size = 0x400, scoped, tag = 'input window, operand 8, single buffered']
    %14 = vsyncpa [#allocation3], 0
    %15 = vsyncpa [#allocation5], 0
    %16 = vsyncpa [#allocation8], 0
    %17 = vsyncpa [#allocation11], 0
    loop: start=0, step=1, limit=4
    $region2: #{net_forward.1} parent=1 // loop_pre_header
      _
    $region3: #{net_forward.1} parent=1 // loop_header
      %s19 = sphi 0, %s23
      %p20 = scmp.ge.s32.totalorder %s19, 4
      %s29 = sphi 0, %s31
      %s32 = sphi 0, %s29
      %s33 = sphi 0, %s32
      %s49 = sphi 0, %s33
      %s53 = sphi 0, %s53
      %s55 = sphi 0, %s53
      %s56 = sphi 0, %s55
      %s70 = sphi 0, %s56
      %s74 = sphi 0, %s74
      %s76 = sphi 0, %s74
      %s77 = sphi 0, %s76
      %s91 = sphi 0, %s77
      %s95 = sphi 0, %s95
      %s97 = sphi 0, %s95
      %s98 = sphi 0, %s97
      %s112 = sphi 0, %s98
      %s116 = sphi 0, %s116
      %s118 = sphi 0, %s116
      %s119 = sphi 0, %s118
      %s133 = sphi 0, %s119
      %s137 = sphi 0, %s137
      %s139 = sphi 0, %s137
      %s140 = sphi 0, %s139
      %s154 = sphi 0, %s140
      %s158 = sphi 0, %s158
      %s160 = sphi 0, %s158
      %s161 = sphi 0, %s160
      %s175 = sphi 0, %s161
      %s179 = sphi 0, %s179
      %s181 = sphi 0, %s179
      %s182 = sphi 0, %s181
      %s196 = sphi 0, %s182
      %s200 = sphi 0, %s200
      %s202 = sphi 0, %s200
      %s203 = sphi 0, %s202
      %s217 = sphi 0, %s203
      %s223 = sphi 0, %s225
      %s226 = sphi 0, %s223
      %s227 = sphi 0, %s226
      %s243 = sphi 0, %s227
    $region4: #{net_forward.1} parent=1 // loop_header_branch
      %22 = sbr.rel (%p20) target = $region8
    $region5: #{net_forward.1} parent=1 // loop_body
      %s24 = ssub.s32 %s19, 1
      %s25 = ssub.s32 %s19, 2
      %s26 = sadd.s32 %s19, 1
      %s27 = ssub.s32 %s19, %s26
      %p28 = scmp.eq.s32.totalorder %s27, 0
      %s30 = sadd.s32 %s29, 1
      %s31 = scalar_select %p28, %s29, %s30
      %p34 = pneg %p28
      %p35 = scmp.eq.s32.totalorder %s19, 1
      %p36 = por %p34, %p35
      %p37 = scmp.ne.s32.totalorder %s29, %s32
      %p38 = scmp.eq.s32.totalorder %s19, 0
      %p39 = por %p37, %p38
      %p40 = scmp.ne.s32.totalorder %s29, %s32
      %p41 = scmp.eq.s32.totalorder %s24, 1
      %p42 = por %p40, %p41
      %p43 = scmp.ne.s32.totalorder %s32, %s33
      %p44 = scmp.eq.s32.totalorder %s24, 0
      %p45 = por %p43, %p44
      %p46 = scmp.ne.s32.totalorder %s32, %s33
      %p47 = scmp.eq.s32.totalorder %s25, 1
      %p48 = por %p46, %p47
      %p50 = scmp.ne.s32.totalorder %s33, %s49
      %p51 = scmp.eq.s32.totalorder %s25, 0
      %p52 = por %p50, %p51
      %s54 = sadd.s32 %s53, 1
      %p57 = scmp.eq.s32.totalorder %s19, 1
      %p58 = scmp.ne.s32.totalorder %s53, %s55
      %p59 = scmp.eq.s32.totalorder %s19, 0
      %p60 = por %p58, %p59
      %p61 = scmp.ne.s32.totalorder %s53, %s55
      %p62 = scmp.eq.s32.totalorder %s24, 1
      %p63 = por %p61, %p62
      %p64 = scmp.ne.s32.totalorder %s55, %s56
      %p65 = scmp.eq.s32.totalorder %s24, 0
      %p66 = por %p64, %p65
      %p67 = scmp.ne.s32.totalorder %s55, %s56
      %p68 = scmp.eq.s32.totalorder %s25, 1
      %p69 = por %p67, %p68
      %p71 = scmp.ne.s32.totalorder %s56, %s70
      %p72 = scmp.eq.s32.totalorder %s25, 0
      %p73 = por %p71, %p72
      %s75 = sadd.s32 %s74, 1
      %p78 = scmp.eq.s32.totalorder %s19, 1
      %p79 = scmp.ne.s32.totalorder %s74, %s76
      %p80 = scmp.eq.s32.totalorder %s19, 0
      %p81 = por %p79, %p80
      %p82 = scmp.ne.s32.totalorder %s74, %s76
      %p83 = scmp.eq.s32.totalorder %s24, 1
      %p84 = por %p82, %p83
      %p85 = scmp.ne.s32.totalorder %s76, %s77
      %p86 = scmp.eq.s32.totalorder %s24, 0
      %p87 = por %p85, %p86
      %p88 = scmp.ne.s32.totalorder %s76, %s77
      %p89 = scmp.eq.s32.totalorder %s25, 1
      %p90 = por %p88, %p89
      %p92 = scmp.ne.s32.totalorder %s77, %s91
      %p93 = scmp.eq.s32.totalorder %s25, 0
      %p94 = por %p92, %p93
      %s96 = sadd.s32 %s95, 1
      %p99 = scmp.eq.s32.totalorder %s19, 1
      %p100 = scmp.ne.s32.totalorder %s95, %s97
      %p101 = scmp.eq.s32.totalorder %s19, 0
      %p102 = por %p100, %p101
      %p103 = scmp.ne.s32.totalorder %s95, %s97
      %p104 = scmp.eq.s32.totalorder %s24, 1
      %p105 = por %p103, %p104
      %p106 = scmp.ne.s32.totalorder %s97, %s98
      %p107 = scmp.eq.s32.totalorder %s24, 0
      %p108 = por %p106, %p107
      %p109 = scmp.ne.s32.totalorder %s97, %s98
      %p110 = scmp.eq.s32.totalorder %s25, 1
      %p111 = por %p109, %p110
      %p113 = scmp.ne.s32.totalorder %s98, %s112
      %p114 = scmp.eq.s32.totalorder %s25, 0
      %p115 = por %p113, %p114
      %s117 = sadd.s32 %s116, 1
      %p120 = scmp.eq.s32.totalorder %s19, 1
      %p121 = scmp.ne.s32.totalorder %s116, %s118
      %p122 = scmp.eq.s32.totalorder %s19, 0
      %p123 = por %p121, %p122
      %p124 = scmp.ne.s32.totalorder %s116, %s118
      %p125 = scmp.eq.s32.totalorder %s24, 1
      %p126 = por %p124, %p125
      %p127 = scmp.ne.s32.totalorder %s118, %s119
      %p128 = scmp.eq.s32.totalorder %s24, 0
      %p129 = por %p127, %p128
      %p130 = scmp.ne.s32.totalorder %s118, %s119
      %p131 = scmp.eq.s32.totalorder %s25, 1
      %p132 = por %p130, %p131
      %p134 = scmp.ne.s32.totalorder %s119, %s133
      %p135 = scmp.eq.s32.totalorder %s25, 0
      %p136 = por %p134, %p135
      %s138 = sadd.s32 %s137, 1
      %p141 = scmp.eq.s32.totalorder %s19, 1
      %p142 = scmp.ne.s32.totalorder %s137, %s139
      %p143 = scmp.eq.s32.totalorder %s19, 0
      %p144 = por %p142, %p143
      %p145 = scmp.ne.s32.totalorder %s137, %s139
      %p146 = scmp.eq.s32.totalorder %s24, 1
      %p147 = por %p145, %p146
      %p148 = scmp.ne.s32.totalorder %s139, %s140
      %p149 = scmp.eq.s32.totalorder %s24, 0
      %p150 = por %p148, %p149
      %p151 = scmp.ne.s32.totalorder %s139, %s140
      %p152 = scmp.eq.s32.totalorder %s25, 1
      %p153 = por %p151, %p152
      %p155 = scmp.ne.s32.totalorder %s140, %s154
      %p156 = scmp.eq.s32.totalorder %s25, 0
      %p157 = por %p155, %p156
      %s159 = sadd.s32 %s158, 1
      %p162 = scmp.eq.s32.totalorder %s19, 1
      %p163 = scmp.ne.s32.totalorder %s158, %s160
      %p164 = scmp.eq.s32.totalorder %s19, 0
      %p165 = por %p163, %p164
      %p166 = scmp.ne.s32.totalorder %s158, %s160
      %p167 = scmp.eq.s32.totalorder %s24, 1
      %p168 = por %p166, %p167
      %p169 = scmp.ne.s32.totalorder %s160, %s161
      %p170 = scmp.eq.s32.totalorder %s24, 0
      %p171 = por %p169, %p170
      %p172 = scmp.ne.s32.totalorder %s160, %s161
      %p173 = scmp.eq.s32.totalorder %s25, 1
      %p174 = por %p172, %p173
      %p176 = scmp.ne.s32.totalorder %s161, %s175
      %p177 = scmp.eq.s32.totalorder %s25, 0
      %p178 = por %p176, %p177
      %s180 = sadd.s32 %s179, 1
      %p183 = scmp.eq.s32.totalorder %s19, 1
      %p184 = scmp.ne.s32.totalorder %s179, %s181
      %p185 = scmp.eq.s32.totalorder %s19, 0
      %p186 = por %p184, %p185
      %p187 = scmp.ne.s32.totalorder %s179, %s181
      %p188 = scmp.eq.s32.totalorder %s24, 1
      %p189 = por %p187, %p188
      %p190 = scmp.ne.s32.totalorder %s181, %s182
      %p191 = scmp.eq.s32.totalorder %s24, 0
      %p192 = por %p190, %p191
      %p193 = scmp.ne.s32.totalorder %s181, %s182
      %p194 = scmp.eq.s32.totalorder %s25, 1
      %p195 = por %p193, %p194
      %p197 = scmp.ne.s32.totalorder %s182, %s196
      %p198 = scmp.eq.s32.totalorder %s25, 0
      %p199 = por %p197, %p198
      %s201 = sadd.s32 %s200, 1
      %p204 = scmp.eq.s32.totalorder %s19, 1
      %p205 = scmp.ne.s32.totalorder %s200, %s202
      %p206 = scmp.eq.s32.totalorder %s19, 0
      %p207 = por %p205, %p206
      %p208 = scmp.ne.s32.totalorder %s200, %s202
      %p209 = scmp.eq.s32.totalorder %s24, 1
      %p210 = por %p208, %p209
      %p211 = scmp.ne.s32.totalorder %s202, %s203
      %p212 = scmp.eq.s32.totalorder %s24, 0
      %p213 = por %p211, %p212
      %p214 = scmp.ne.s32.totalorder %s202, %s203
      %p215 = scmp.eq.s32.totalorder %s25, 1
      %p216 = por %p214, %p215
      %p218 = scmp.ne.s32.totalorder %s203, %s217
      %p219 = scmp.eq.s32.totalorder %s25, 0
      %p220 = por %p218, %p219
      %s221 = ssub.s32 %s19, %s26
      %p222 = scmp.eq.s32.totalorder %s221, 0
      %s224 = sadd.s32 %s223, 1
      %s225 = scalar_select %p222, %s223, %s224
      %p228 = pneg %p222
      %p229 = scmp.eq.s32.totalorder %s19, 1
      %p230 = por %p228, %p229
      %p231 = scmp.ne.s32.totalorder %s223, %s226
      %p232 = scmp.eq.s32.totalorder %s19, 0
      %p233 = por %p231, %p232
      %p234 = scmp.ne.s32.totalorder %s223, %s226
      %p235 = scmp.eq.s32.totalorder %s24, 1
      %p236 = por %p234, %p235
      %p237 = scmp.ne.s32.totalorder %s226, %s227
      %p238 = scmp.eq.s32.totalorder %s24, 0
      %p239 = por %p237, %p238
      %p240 = scmp.ne.s32.totalorder %s226, %s227
      %p241 = scmp.eq.s32.totalorder %s25, 1
      %p242 = por %p240, %p241
      %p244 = scmp.ne.s32.totalorder %s227, %s243
      %p245 = scmp.eq.s32.totalorder %s25, 0
      %p246 = por %p244, %p245
      %p247 = scmp.le.s32.totalorder 1, %s19
      %p248 = scmp.lt.s32.totalorder %s19, 3
      %p249 = pnand %p247, %p248
      %p250 = pneg %p249
      // Predicated region
      $region9: #{net_forward.1} parent=5 // pred_check
        _
      $region10: #{net_forward.1} parent=5 // pred_check_branch
        %252 = sbr.rel (%p249) target = $region12
      $region11: #{net_forward.1} parent=5 // pred_region
        %s253 = ssub.s32 %s19, 1
        // Predicated region
        $region13: #{net_forward.1} parent=11 // pred_check
          %p254 = pneg %p66
        $region14: #{net_forward.1} parent=11 // pred_check_branch
          %256 = sbr.rel (%p254) target = $region16
        $region15: #{net_forward.1} parent=11 // pred_region
          %258 = vsyncadd [#allocation3], 0
          %s259 = sshll.u32 %s1, 4
          %s260 = int_to_ptr.hbm [resolvable:$true] %s259
          %s261 = sshll.u32 [#allocation2], 4
          %s262 = int_to_ptr.vmem [resolvable:$true] %s261
          %267 = dma.hbm_to_vmem [thread:$0]  %s260, 256, %s262, [#allocation3], 64, 64, 4
        $region16: #{net_forward.1} parent=11 // pred_fallthru
          _
        // Predicated region
        $region17: #{net_forward.1} parent=11 // pred_check
          %p268 = pneg %p87
        $region18: #{net_forward.1} parent=11 // pred_check_branch
          %270 = sbr.rel (%p268) target = $region20
        $region19: #{net_forward.1} parent=11 // pred_region
          %272 = vsyncadd [#allocation5], 0
          %s274 = sshll.u32 %s2, 4
          %s275 = int_to_ptr.hbm [resolvable:$true] %s274
          %s276 = sshll.u32 [#allocation4], 4
          %s277 = int_to_ptr.vmem [resolvable:$true] %s276
          %279 = dma.hbm_to_vmem [thread:$0]  %s275, 16, %s277, [#allocation5]
        $region20: #{net_forward.1} parent=11 // pred_fallthru
          _
        // Predicated region
        $region21: #{net_forward.1} parent=11 // pred_check
          %p280 = pneg %p108
        $region22: #{net_forward.1} parent=11 // pred_check_branch
          %282 = sbr.rel (%p280) target = $region24
        $region23: #{net_forward.1} parent=11 // pred_region
          %284 = vsyncadd [#allocation5], 0
          %s285 = sshll.u32 %s3, 4
          %s286 = int_to_ptr.hbm [resolvable:$true] %s285
          %s287 = sshll.u32 [#allocation6], 4
          %s288 = int_to_ptr.vmem [resolvable:$true] %s287
          %293 = dma.hbm_to_vmem [thread:$0]  %s286, 1024, %s288, [#allocation5], 64, 64, 4
        $region24: #{net_forward.1} parent=11 // pred_fallthru
          _
        // Predicated region
        $region25: #{net_forward.1} parent=11 // pred_check
          %p294 = pneg %p129
        $region26: #{net_forward.1} parent=11 // pred_check_branch
          %296 = sbr.rel (%p294) target = $region28
        $region27: #{net_forward.1} parent=11 // pred_region
          %298 = vsyncadd [#allocation8], 0
          %s300 = sshll.u32 %s4, 4
          %s301 = int_to_ptr.hbm [resolvable:$true] %s300
          %s302 = sshll.u32 [#allocation7], 4
          %s303 = int_to_ptr.vmem [resolvable:$true] %s302
          %305 = dma.hbm_to_vmem [thread:$0]  %s301, 16, %s303, [#allocation8]
        $region28: #{net_forward.1} parent=11 // pred_fallthru
          _
        // Predicated region
        $region29: #{net_forward.1} parent=11 // pred_check
          %p306 = pneg %p150
        $region30: #{net_forward.1} parent=11 // pred_check_branch
          %308 = sbr.rel (%p306) target = $region32
        $region31: #{net_forward.1} parent=11 // pred_region
          %310 = vsyncadd [#allocation8], 0
          %s311 = sshll.u32 %s5, 4
          %s312 = int_to_ptr.hbm [resolvable:$true] %s311
          %s313 = sshll.u32 [#allocation9], 4
          %s314 = int_to_ptr.vmem [resolvable:$true] %s313
          %319 = dma.hbm_to_vmem [thread:$0]  %s312, 1024, %s314, [#allocation8], 64, 64, 4
        $region32: #{net_forward.1} parent=11 // pred_fallthru
          _
        // Predicated region
        $region33: #{net_forward.1} parent=11 // pred_check
          %p320 = pneg %p171
        $region34: #{net_forward.1} parent=11 // pred_check_branch
          %322 = sbr.rel (%p320) target = $region36
        $region35: #{net_forward.1} parent=11 // pred_region
          %324 = vsyncadd [#allocation11], 0
          %s326 = sshll.u32 %s6, 4
          %s327 = int_to_ptr.hbm [resolvable:$true] %s326
          %s328 = sshll.u32 [#allocation10], 4
          %s329 = int_to_ptr.vmem [resolvable:$true] %s328
          %331 = dma.hbm_to_vmem [thread:$0]  %s327, 16, %s329, [#allocation11]
        $region36: #{net_forward.1} parent=11 // pred_fallthru
          _
        // Predicated region
        $region37: #{net_forward.1} parent=11 // pred_check
          %p332 = pneg %p192
        $region38: #{net_forward.1} parent=11 // pred_check_branch
          %334 = sbr.rel (%p332) target = $region40
        $region39: #{net_forward.1} parent=11 // pred_region
          _
        $region40: #{net_forward.1} parent=11 // pred_fallthru
          _
        // Predicated region
        $region41: #{net_forward.1} parent=11 // pred_check
          %p335 = pneg %p213
        $region42: #{net_forward.1} parent=11 // pred_check_branch
          %337 = sbr.rel (%p335) target = $region44
        $region43: #{net_forward.1} parent=11 // pred_region
          %339 = vsyncadd [#allocation11], 0
          %s341 = sshll.u32 %s8, 4
          %s342 = int_to_ptr.hbm [resolvable:$true] %s341
          %s343 = sshll.u32 [#allocation12], 4
          %s344 = int_to_ptr.vmem [resolvable:$true] %s343
          %346 = dma.hbm_to_vmem [thread:$0]  %s342, 16, %s344, [#allocation11]
        $region44: #{net_forward.1} parent=11 // pred_fallthru
          _
      $region12: #{net_forward.1} parent=5 // pred_fallthru
        _
      %p347 = scmp.lt.s32.totalorder %s19, 2
      // Predicated region
      $region45: #{net_forward.1} parent=5 // pred_check
        %p348 = pneg %p347
      $region46: #{net_forward.1} parent=5 // pred_check_branch
        %350 = sbr.rel (%p348) target = $region48
      $region47: #{net_forward.1} parent=5 // pred_region
        // Predicated region
        $region49: #{net_forward.1} parent=47 // pred_check
          %p351 = pneg %p39
        $region50: #{net_forward.1} parent=47 // pred_check_branch
          %353 = sbr.rel (%p351) target = $region52
        $region51: #{net_forward.1} parent=47 // pred_region
          %s354 = smul.u32 2, %s19
          %p355 = scmp.lt.s32.totalorder %s354, 3
          %s356 = scalar_select %p355, %s354, 3
          %s357 = smul.addr %s356, 8
          %s358 = scalar_lea.vmem %s0, %s357
          %s359 = smul.u32 2, %s19
        $region52: #{net_forward.1} parent=47 // pred_fallthru
          _
      $region48: #{net_forward.1} parent=5 // pred_fallthru
        _
      %p360 = scmp.le.s32.totalorder 1, %s19
      %p361 = scmp.lt.s32.totalorder %s19, 3
      %p362 = pnand %p360, %p361
      %p363 = pneg %p362
      // Predicated region
      $region53: #{net_forward.1} parent=5 // pred_check
        _
      $region54: #{net_forward.1} parent=5 // pred_check_branch
        %365 = sbr.rel (%p362) target = $region56
      $region55: #{net_forward.1} parent=5 // pred_region
        %s366 = ssub.s32 %s19, 1
        // Predicated region
        $region57: #{net_forward.1} parent=55 // pred_check
          %p367 = pneg %p66
        $region58: #{net_forward.1} parent=55 // pred_check_branch
          %369 = sbr.rel (%p367) target = $region60
        $region59: #{net_forward.1} parent=55 // pred_region
          %371 = dma.done [#allocation3], 256
        $region60: #{net_forward.1} parent=55 // pred_fallthru
          _
        // Predicated region
        $region61: #{net_forward.1} parent=55 // pred_check
          %p372 = pneg %p87
        $region62: #{net_forward.1} parent=55 // pred_check_branch
          %374 = sbr.rel (%p372) target = $region64
        $region63: #{net_forward.1} parent=55 // pred_region
          %376 = dma.done [#allocation5], 16
        $region64: #{net_forward.1} parent=55 // pred_fallthru
          _
        // Predicated region
        $region65: #{net_forward.1} parent=55 // pred_check
          %p377 = pneg %p108
        $region66: #{net_forward.1} parent=55 // pred_check_branch
          %379 = sbr.rel (%p377) target = $region68
        $region67: #{net_forward.1} parent=55 // pred_region
          %381 = dma.done [#allocation5], 1024
        $region68: #{net_forward.1} parent=55 // pred_fallthru
          _
        // Predicated region
        $region69: #{net_forward.1} parent=55 // pred_check
          %p382 = pneg %p129
        $region70: #{net_forward.1} parent=55 // pred_check_branch
          %384 = sbr.rel (%p382) target = $region72
        $region71: #{net_forward.1} parent=55 // pred_region
          %386 = dma.done [#allocation8], 16
        $region72: #{net_forward.1} parent=55 // pred_fallthru
          _
        // Predicated region
        $region73: #{net_forward.1} parent=55 // pred_check
          %p387 = pneg %p150
        $region74: #{net_forward.1} parent=55 // pred_check_branch
          %389 = sbr.rel (%p387) target = $region76
        $region75: #{net_forward.1} parent=55 // pred_region
          %391 = dma.done [#allocation8], 1024
        $region76: #{net_forward.1} parent=55 // pred_fallthru
          _
        // Predicated region
        $region77: #{net_forward.1} parent=55 // pred_check
          %p392 = pneg %p171
        $region78: #{net_forward.1} parent=55 // pred_check_branch
          %394 = sbr.rel (%p392) target = $region80
        $region79: #{net_forward.1} parent=55 // pred_region
          %396 = dma.done [#allocation11], 16
        $region80: #{net_forward.1} parent=55 // pred_fallthru
          _
        // Predicated region
        $region81: #{net_forward.1} parent=55 // pred_check
          %p397 = pneg %p213
        $region82: #{net_forward.1} parent=55 // pred_check_branch
          %399 = sbr.rel (%p397) target = $region84
        $region83: #{net_forward.1} parent=55 // pred_region
          %401 = dma.done [#allocation11], 16
        $region84: #{net_forward.1} parent=55 // pred_fallthru
          _
        %s402 = smul.u32 2, %s24
        %p403 = scmp.lt.s32.totalorder %s402, 3
        %s404 = scalar_select %p403, %s402, 3
        %s405 = smul.addr %s404, 8
        %s406 = scalar_lea.vmem %s0, %s405
        %p407 = pneg %p45
        %p408 = pneg %p42
        %p409 = pneg %p66
        %p410 = pneg %p63
        %p411 = pneg %p87
        %p412 = pneg %p84
        %p413 = pneg %p108
        %p414 = pneg %p105
        %p415 = pneg %p129
        %p416 = pneg %p126
        %p417 = pneg %p150
        %p418 = pneg %p147
        %p419 = pneg %p171
        %p420 = pneg %p168
        %p421 = pneg %p192
        %p422 = pneg %p189
        %p423 = pneg %p213
        %p424 = pneg %p210
        %p425 = pneg %p239
        %p426 = pneg %p236
        %s427 = smul.u32 2, %s24
        %p428 = scmp.lt.s32.totalorder %s427, 3
        %s429 = scalar_select %p428, %s427, 3
        %s430 = smul.addr %s429, 8
        %s431 = scalar_lea.vmem %s9, %s430
        %s432 = smul.u32 2, %s24
        %p433 = scmp.lt.s32.totalorder %s432, 3
        %s434 = scalar_select %p433, %s432, 3
        %s435 = smul.addr %s434, 8
        %s436 = scalar_lea.vmem %s0, %s435
        %s437 = smul.u32 2, %s24
        %s438 = smul.u32 2, %s24
        %p439 = scmp.lt.s32.totalorder %s438, 3
        %s440 = scalar_select %p439, %s438, 3
        %s441 = smul.addr %s440, 8
        %s442 = scalar_lea.vmem %s9, %s441
        %s443 = smul.u32 2, %s24
        %v445 = vld [vmem:[%s436] sm:$0xff]
        %v446 = vld [vmem:[%s436 + $0x8] sm:$0xff]
        %v447 = vpack.c.bf16 %v446, %v445
        %v448 = vld [vmem:[#allocation2] sm:$0xf]
        %v449 = vld [vmem:[#allocation2 + $0x4] sm:$0xf]
        %v450 = vld [vmem:[#allocation2 + $0x8] sm:$0xf]
        %v451 = vld [vmem:[#allocation2 + $0xc] sm:$0xf]
        %v452 = vld [vmem:[#allocation4] sm:$0x1]
        %v454 = vperm.slane %v452, 0
        %v460 = vunpack.c.l.b16 %v448
        %v461 = vunpack.c.l.b16 %v449
        %v462 = vunpack.c.l.b16 %v450
        %v463 = vunpack.c.l.b16 %v451
        %v464 = vpack.c.b16 %v461, %v460
        %v465 = vpack.c.b16 %v463, %v462
        %vm468 = vcmask 261120
        %v470 = vsel %vm468, %v447, 0
        %472 = vmatpush.bf16.msra.mxu0 0
        %473 = vmatpush.bf16.msra.mxu0 0
        %474 = vmatpush.bf16.msra.mxu0 0
        %475 = vmatpush.bf16.msra.mxu0 0
        %476 = vmatpush.bf16.msra.mxu0 0
        %477 = vmatpush.bf16.msra.mxu0 0
        %478 = vmatpush.bf16.msra.mxu0 %v465
        %479 = vmatpush.bf16.msra.mxu0 %v464
        %480 = vmatmul.bf16.gmra.mxu0 %v470
        %v481 = vpop.f32.mrf.mxu0
        %v482 = vadd.f32 %v454, %v481
        %v483 = vpop.f32.mrf.mxu0
        %v484 = vadd.f32 %v454, %v483
        %485 = vdwg.mxu0
        %v486 = vmul.f32 %v482, 0.2
        %v487 = vmul.f32 %v484, 0.2
        %v488 = vmax.f32 %v482, %v486
        %v489 = vmax.f32 %v484, %v487
        %v490 = vpack.c.bf16 %v489, %v488
        %v491 = vld [vmem:[#allocation6] sm:$0xf]
        %v492 = vld [vmem:[#allocation6 + $0x4] sm:$0xf]
        %v493 = vld [vmem:[#allocation6 + $0x8] sm:$0xf]
        %v494 = vld [vmem:[#allocation6 + $0xc] sm:$0xf]
        %v495 = vld [vmem:[#allocation6 + $0x10] sm:$0xf]
        %v496 = vld [vmem:[#allocation6 + $0x14] sm:$0xf]
        %v497 = vld [vmem:[#allocation6 + $0x18] sm:$0xf]
        %v498 = vld [vmem:[#allocation6 + $0x1c] sm:$0xf]
        %v499 = vld [vmem:[#allocation6 + $0x20] sm:$0xf]
        %v500 = vld [vmem:[#allocation6 + $0x24] sm:$0xf]
        %v501 = vld [vmem:[#allocation6 + $0x28] sm:$0xf]
        %v502 = vld [vmem:[#allocation6 + $0x2c] sm:$0xf]
        %v503 = vld [vmem:[#allocation6 + $0x30] sm:$0xf]
        %v504 = vld [vmem:[#allocation6 + $0x34] sm:$0xf]
        %v505 = vld [vmem:[#allocation6 + $0x38] sm:$0xf]
        %v506 = vld [vmem:[#allocation6 + $0x3c] sm:$0xf]
        %v507 = vld [vmem:[#allocation7] sm:$0x1]
        %v509 = vperm.slane %v507, 0
        %v527 = vunpack.c.l.b16 %v491
        %v528 = vunpack.c.l.b16 %v492
        %v529 = vunpack.c.l.b16 %v493
        %v530 = vunpack.c.l.b16 %v494
        %v531 = vunpack.c.l.b16 %v495
        %v532 = vunpack.c.l.b16 %v496
        %v533 = vunpack.c.l.b16 %v497
        %v534 = vunpack.c.l.b16 %v498
        %v535 = vunpack.c.l.b16 %v499
        %v536 = vunpack.c.l.b16 %v500
        %v537 = vunpack.c.l.b16 %v501
        %v538 = vunpack.c.l.b16 %v502
        %v539 = vunpack.c.l.b16 %v503
        %v540 = vunpack.c.l.b16 %v504
        %v541 = vunpack.c.l.b16 %v505
        %v542 = vunpack.c.l.b16 %v506
        %v543 = vpack.c.b16 %v528, %v527
        %v544 = vpack.c.b16 %v530, %v529
        %v545 = vpack.c.b16 %v532, %v531
        %v546 = vpack.c.b16 %v534, %v533
        %v547 = vpack.c.b16 %v536, %v535
        %v548 = vpack.c.b16 %v538, %v537
        %v549 = vpack.c.b16 %v540, %v539
        %v550 = vpack.c.b16 %v542, %v541
        %559 = vmatpush.bf16.msra.mxu0 %v550
        %560 = vmatpush.bf16.msra.mxu0 %v549
        %561 = vmatpush.bf16.msra.mxu0 %v548
        %562 = vmatpush.bf16.msra.mxu0 %v547
        %563 = vmatpush.bf16.msra.mxu0 %v546
        %564 = vmatpush.bf16.msra.mxu0 %v545
        %565 = vmatpush.bf16.msra.mxu0 %v544
        %566 = vmatpush.bf16.msra.mxu0 %v543
        %567 = vmatmul.bf16.gmra.mxu0 %v490
        %v568 = vpop.f32.mrf.mxu0
        %v569 = vadd.f32 %v509, %v568
        %v570 = vpop.f32.mrf.mxu0
        %v571 = vadd.f32 %v509, %v570
        %572 = vdwg.mxu0
        %v573 = vmul.f32 %v569, 0.2
        %v574 = vmul.f32 %v571, 0.2
        %v575 = vmax.f32 %v569, %v573
        %v576 = vmax.f32 %v571, %v574
        %v577 = vpack.c.bf16 %v576, %v575
        %v578 = vld [vmem:[#allocation9] sm:$0xf]
        %v579 = vld [vmem:[#allocation9 + $0x4] sm:$0xf]
        %v580 = vld [vmem:[#allocation9 + $0x8] sm:$0xf]
        %v581 = vld [vmem:[#allocation9 + $0xc] sm:$0xf]
        %v582 = vld [vmem:[#allocation9 + $0x10] sm:$0xf]
        %v583 = vld [vmem:[#allocation9 + $0x14] sm:$0xf]
        %v584 = vld [vmem:[#allocation9 + $0x18] sm:$0xf]
        %v585 = vld [vmem:[#allocation9 + $0x1c] sm:$0xf]
        %v586 = vld [vmem:[#allocation9 + $0x20] sm:$0xf]
        %v587 = vld [vmem:[#allocation9 + $0x24] sm:$0xf]
        %v588 = vld [vmem:[#allocation9 + $0x28] sm:$0xf]
        %v589 = vld [vmem:[#allocation9 + $0x2c] sm:$0xf]
        %v590 = vld [vmem:[#allocation9 + $0x30] sm:$0xf]
        %v591 = vld [vmem:[#allocation9 + $0x34] sm:$0xf]
        %v592 = vld [vmem:[#allocation9 + $0x38] sm:$0xf]
        %v593 = vld [vmem:[#allocation9 + $0x3c] sm:$0xf]
        %v594 = vld [vmem:[#allocation10] sm:$0x1]
        %v596 = vperm.slane %v594, 0
        %v614 = vunpack.c.l.b16 %v578
        %v615 = vunpack.c.l.b16 %v579
        %v616 = vunpack.c.l.b16 %v580
        %v617 = vunpack.c.l.b16 %v581
        %v618 = vunpack.c.l.b16 %v582
        %v619 = vunpack.c.l.b16 %v583
        %v620 = vunpack.c.l.b16 %v584
        %v621 = vunpack.c.l.b16 %v585
        %v622 = vunpack.c.l.b16 %v586
        %v623 = vunpack.c.l.b16 %v587
        %v624 = vunpack.c.l.b16 %v588
        %v625 = vunpack.c.l.b16 %v589
        %v626 = vunpack.c.l.b16 %v590
        %v627 = vunpack.c.l.b16 %v591
        %v628 = vunpack.c.l.b16 %v592
        %v629 = vunpack.c.l.b16 %v593
        %v630 = vpack.c.b16 %v615, %v614
        %v631 = vpack.c.b16 %v617, %v616
        %v632 = vpack.c.b16 %v619, %v618
        %v633 = vpack.c.b16 %v621, %v620
        %v634 = vpack.c.b16 %v623, %v622
        %v635 = vpack.c.b16 %v625, %v624
        %v636 = vpack.c.b16 %v627, %v626
        %v637 = vpack.c.b16 %v629, %v628
        %646 = vmatpush.bf16.msra.mxu0 %v637
        %647 = vmatpush.bf16.msra.mxu0 %v636
        %648 = vmatpush.bf16.msra.mxu0 %v635
        %649 = vmatpush.bf16.msra.mxu0 %v634
        %650 = vmatpush.bf16.msra.mxu0 %v633
        %651 = vmatpush.bf16.msra.mxu0 %v632
        %652 = vmatpush.bf16.msra.mxu0 %v631
        %653 = vmatpush.bf16.msra.mxu0 %v630
        %654 = vmatmul.bf16.gmra.mxu0 %v577
        %v655 = vpop.f32.mrf.mxu0
        %v656 = vadd.f32 %v596, %v655
        %v657 = vpop.f32.mrf.mxu0
        %v658 = vadd.f32 %v596, %v657
        %659 = vdwg.mxu0
        %v660 = vmul.f32 %v656, 0.2
        %v661 = vmul.f32 %v658, 0.2
        %v662 = vmax.f32 %v656, %v660
        %v663 = vmax.f32 %v658, %v661
        %v664 = vpack.c.bf16 %v663, %v662
        %v665 = vld [vmem:[%s7] sm:$0xf]
        %v666 = vld [vmem:[%s7 + $0x4] sm:$0xf]
        %v667 = vld [vmem:[%s7 + $0x8] sm:$0xf]
        %v668 = vld [vmem:[%s7 + $0xc] sm:$0xf]
        %v669 = vld [vmem:[%s7 + $0x10] sm:$0xf]
        %v670 = vld [vmem:[%s7 + $0x14] sm:$0xf]
        %v671 = vld [vmem:[%s7 + $0x18] sm:$0xf]
        %v672 = vld [vmem:[%s7 + $0x1c] sm:$0xf]
        %v673 = vld [vmem:[%s7 + $0x20] sm:$0xf]
        %v674 = vld [vmem:[%s7 + $0x24] sm:$0xf]
        %v675 = vld [vmem:[%s7 + $0x28] sm:$0xf]
        %v676 = vld [vmem:[%s7 + $0x2c] sm:$0xf]
        %v677 = vld [vmem:[%s7 + $0x30] sm:$0xf]
        %v678 = vld [vmem:[%s7 + $0x34] sm:$0xf]
        %v679 = vld [vmem:[%s7 + $0x38] sm:$0xf]
        %v680 = vld [vmem:[%s7 + $0x3c] sm:$0xf]
        %v681 = vld [vmem:[#allocation12] sm:$0x1]
        %v683 = vperm.slane %v681, 0
        %v701 = vunpack.c.l.b16 %v665
        %v702 = vunpack.c.l.b16 %v666
        %v703 = vunpack.c.l.b16 %v667
        %v704 = vunpack.c.l.b16 %v668
        %v705 = vunpack.c.l.b16 %v669
        %v706 = vunpack.c.l.b16 %v670
        %v707 = vunpack.c.l.b16 %v671
        %v708 = vunpack.c.l.b16 %v672
        %v709 = vunpack.c.l.b16 %v673
        %v710 = vunpack.c.l.b16 %v674
        %v711 = vunpack.c.l.b16 %v675
        %v712 = vunpack.c.l.b16 %v676
        %v713 = vunpack.c.l.b16 %v677
        %v714 = vunpack.c.l.b16 %v678
        %v715 = vunpack.c.l.b16 %v679
        %v716 = vunpack.c.l.b16 %v680
        %v717 = vpack.c.b16 %v702, %v701
        %v718 = vpack.c.b16 %v704, %v703
        %v719 = vpack.c.b16 %v706, %v705
        %v720 = vpack.c.b16 %v708, %v707
        %v721 = vpack.c.b16 %v710, %v709
        %v722 = vpack.c.b16 %v712, %v711
        %v723 = vpack.c.b16 %v714, %v713
        %v724 = vpack.c.b16 %v716, %v715
        %733 = vmatpush.bf16.msra.mxu0 %v724
        %734 = vmatpush.bf16.msra.mxu0 %v723
        %735 = vmatpush.bf16.msra.mxu0 %v722
        %736 = vmatpush.bf16.msra.mxu0 %v721
        %737 = vmatpush.bf16.msra.mxu0 %v720
        %738 = vmatpush.bf16.msra.mxu0 %v719
        %739 = vmatpush.bf16.msra.mxu0 %v718
        %740 = vmatpush.bf16.msra.mxu0 %v717
        %741 = vmatmul.bf16.gmra.mxu0 %v664
        %v742 = vpop.f32.mrf.mxu0
        %v743 = vadd.f32 %v683, %v742
        %v744 = vpop.f32.mrf.mxu0
        %v745 = vadd.f32 %v683, %v744
        %746 = vdwg.mxu0
        %747 = vmax.xlane.f32.xlu0 %v743
        %v748 = vpop.xlane.xlu0 %747
        %749 = vmax.xlane.f32.xlu0 %v745
        %v750 = vpop.xlane.xlu0 %749
        %v751 = vsub.f32 %v743, %v748
        %v752 = vsub.f32 %v745, %v750
        %v753 = vmul.f32 %v751, 1.442695
        %v754 = vpow.pop %v753
        %v755 = vmul.f32 %v752, 1.442695
        %v756 = vpow.pop %v755
        %757 = vadd.xlane.f32.xlu0 %v754
        %v758 = vpop.xlane.xlu0 %757
        %759 = vadd.xlane.f32.xlu0 %v756
        %v760 = vpop.xlane.xlu0 %759
        %v761 = vrcp.pop %v758
        %v762 = vmul.f32 %v758, %v761
        %v763 = vsub.f32 1.0, %v762
        %v764 = vmul.f32 %v761, %v763
        %v765 = vadd.f32 %v761, %v764
        %vm766 = vweird.f32 %v758
        %vm767 = vweird.f32 %v761
        %vm768 = vmor %vm766, %vm767
        %v769 = vsel %vm768, %v761, %v765
        %v770 = vand.u32 2147483647, %v758
        %vm771 = vcmp.eq.f32.partialorder %v770, 8.507059e+37
        %v772 = vand.u32 %v758, 2147483648
        %v773 = vor.u32 1.1754944e-38, %v772
        %v774 = vsel %vm771, %v773, %v769
        %v775 = vmul.f32 %v754, %v774
        %v776 = vrcp.pop %v760
        %v777 = vmul.f32 %v760, %v776
        %v778 = vsub.f32 1.0, %v777
        %v779 = vmul.f32 %v776, %v778
        %v780 = vadd.f32 %v776, %v779
        %vm781 = vweird.f32 %v760
        %vm782 = vweird.f32 %v776
        %vm783 = vmor %vm781, %vm782
        %v784 = vsel %vm783, %v776, %v780
        %v785 = vand.u32 2147483647, %v760
        %vm786 = vcmp.eq.f32.partialorder %v785, 8.507059e+37
        %v787 = vand.u32 %v760, 2147483648
        %v788 = vor.u32 1.1754944e-38, %v787
        %v789 = vsel %vm786, %v788, %v784
        %v790 = vmul.f32 %v756, %v789
        %791 = vst [vmem:[%s442] sm:$0xff] %v775
        %792 = vst [vmem:[%s442 + $0x8] sm:$0xff] %v790
        %s793 = smul.u32 2, %s24
        %p794 = scmp.lt.s32.totalorder %s793, 3
        %s795 = scalar_select %p794, %s793, 3
        %s796 = smul.addr %s795, 8
        %s797 = scalar_lea.vmem %s9, %s796
        // Predicated region
        $region85: #{net_forward.1} parent=55 // pred_check
          %p798 = pneg %p236
        $region86: #{net_forward.1} parent=55 // pred_check_branch
          %800 = sbr.rel (%p798) target = $region88
        $region87: #{net_forward.1} parent=55 // pred_region
          %s801 = smul.u32 2, %s24
        $region88: #{net_forward.1} parent=55 // pred_fallthru
          _
      $region56: #{net_forward.1} parent=5 // pred_fallthru
        _
      %p802 = scmp.le.s32.totalorder 2, %s19
      // Predicated region
      $region89: #{net_forward.1} parent=5 // pred_check
        %p803 = pneg %p802
      $region90: #{net_forward.1} parent=5 // pred_check_branch
        %805 = sbr.rel (%p803) target = $region92
      $region91: #{net_forward.1} parent=5 // pred_region
        %s806 = ssub.s32 %s19, 2
        // Predicated region
        $region93: #{net_forward.1} parent=91 // pred_check
          %p807 = pneg %p242
        $region94: #{net_forward.1} parent=91 // pred_check_branch
          %809 = sbr.rel (%p807) target = $region96
        $region95: #{net_forward.1} parent=91 // pred_region
          %s810 = smul.u32 2, %s25
          %p811 = scmp.lt.s32.totalorder %s810, 3
          %s812 = scalar_select %p811, %s810, 3
          %s813 = smul.addr %s812, 8
          %s814 = scalar_lea.vmem %s9, %s813
        $region96: #{net_forward.1} parent=91 // pred_fallthru
          _
      $region92: #{net_forward.1} parent=5 // pred_fallthru
        _
    $region6: #{net_forward.1} parent=1 // loop_footer
      %s23 = sadd.s32 1, %s19
    $region7: #{net_forward.1} parent=1 // loop_footer_branch
      %18 = sbr.rel target = $region3
    $region8: #{net_forward.1} parent=1 // loop_exit
      _
    %815 = vsyncpa [#allocation3], 1
    %s816 = scalar_lea.sflag [#allocation3], 1
    %817 = vsyncpa %s816, 1
    %818 = vsyncpa [#allocation5], 1
    %819 = vsyncpa [#allocation8], 1
    %820 = vsyncpa [#allocation11], 1

</llo_original>
